<compile_context>
chip_gen: v5e
topology: v5e:2x2
jax: 0.10.0
libtpu: 0.0.40
codegen_flags: <defaults>
</compile_context>

<pallas_src>
import functools

import jax
import jax.numpy as jnp
from jax import lax
from jax.experimental import pallas as pl
from jax.experimental.pallas import tpu as pltpu


def _dropout_kernel(seed_ref, x_ref, o_ref, *, rate, block_rows):
    """Dropout on one (block_rows, lanes) tile using a counter-based hash RNG."""
    lanes = x_ref.shape[-1]

    # Global element index of every lane position in this tile.
    row = lax.broadcasted_iota(jnp.uint32, x_ref.shape, 0)
    col = lax.broadcasted_iota(jnp.uint32, x_ref.shape, 1)
    tile = pl.program_id(0).astype(jnp.uint32)
    idx = (tile * jnp.uint32(block_rows) + row) * jnp.uint32(lanes) + col

    # splitmix32-style mixer of (seed, index) -> uniform 32-bit integer.
    h = idx + seed_ref[0].astype(jnp.uint32) * jnp.uint32(0x9E3779B9)
    h = h ^ (h >> 16)
    h = h * jnp.uint32(0x7FEB352D)
    h = h ^ (h >> 15)
    h = h * jnp.uint32(0x846CA68B)
    h = h ^ (h >> 16)

    # keep with probability (1 - rate):  u32/2^32 > rate  <=>  u32 >= threshold
    threshold = jnp.uint32(min(int(rate * 4294967296.0), 0xFFFFFFFF))
    keep = h >= threshold

    scale = jnp.float32(1.0 / (1.0 - rate))
    xv = x_ref[...].astype(jnp.float32)
    o_ref[...] = jnp.where(keep, xv * scale, jnp.float32(0.0)).astype(o_ref.dtype)


def pallas_dropout(x, dropout_rate, seed=0):
    """Dropout on an arbitrary-shaped tensor using a Pallas TPU kernel."""
    orig_shape = x.shape
    dtype = x.dtype
    rate = float(dropout_rate)
    if rate <= 0.0:
        return x

    flat = x.reshape(-1)                 # keep native dtype: no extra HBM pass
    n = flat.shape[0]
    itemsize = jnp.dtype(dtype).itemsize

    # Lane-dense layout: widest power-of-two multiple of 128 (<= 4096) that
    # still leaves at least one full 8-row tile of real data.
    lanes = 128
    for cand in (4096, 2048, 1024, 512, 256):
        if n >= cand * 8:
            lanes = cand
            break

    # Tile rows: target ~2 MiB tiles (double-buffered in+out stays within the
    # default scoped-VMEM budgets on v5e/v6e/v7x), multiple of 8, capped by the
    # (row-padded) data size so small inputs get a small single tile.
    rows_needed = -(-n // lanes)
    rows_rounded = -(-rows_needed // 8) * 8
    block_rows = max(8, min(512, (2 * 1024 * 1024) // (lanes * itemsize)))
    block_rows -= block_rows % 8
    block_rows = min(block_rows, rows_rounded)

    rows = -(-rows_needed // block_rows) * block_rows
    padded_n = rows * lanes
    if padded_n != n:
        flat = jnp.pad(flat, (0, padded_n - n))
    x2d = flat.reshape(rows, lanes)
    grid = (rows // block_rows,)

    seed_arr = jnp.array([seed], dtype=jnp.int32)
    kernel = functools.partial(_dropout_kernel, rate=rate, block_rows=block_rows)

    out2d = pl.pallas_call(
        kernel,
        out_shape=jax.ShapeDtypeStruct((rows, lanes), dtype),
        grid_spec=pltpu.PrefetchScalarGridSpec(
            num_scalar_prefetch=1,
            grid=grid,
            in_specs=[pl.BlockSpec((block_rows, lanes), lambda i, seed: (i, 0))],
            out_specs=pl.BlockSpec((block_rows, lanes), lambda i, seed: (i, 0)),
        ),
        compiler_params=pltpu.CompilerParams(
            dimension_semantics=("parallel",),  # tiles fully independent
        ),
    )(seed_arr, x2d)

    out_flat = out2d.reshape(-1)
    if padded_n != n:
        out_flat = out_flat[:n]
    return out_flat.reshape(orig_shape)


if __name__ == "__main__":
    key = jax.random.PRNGKey(0)
    # NCHW input, small shapes: batch=2, channels=4, spatial=16x16
    x = jax.random.normal(key, (2, 4, 16, 16), dtype=jnp.float32)
    dropout_rate = 0.3

    out = pallas_dropout(x, dropout_rate, seed=0)
    out = jax.block_until_ready(out)

    # Sanity checks on dropout semantics (not a bit-exact match to torch RNG).
    assert out.shape == x.shape and out.dtype == x.dtype
    scale = 1.0 / (1.0 - dropout_rate)
    kept = out != 0.0
    # Kept elements are exactly x * scale.
    assert jnp.allclose(out[kept], (x * scale)[kept], rtol=1e-6, atol=1e-6)
    # Roughly (1 - rate) of elements are kept.
    keep_frac = float(jnp.mean(kept.astype(jnp.float32)))
    assert 0.5 < keep_frac < 0.9, f"unexpected keep fraction {keep_frac}"

    print("KERNEL_OK")
</pallas_src>

<mosaic_0001>
module attributes {stable_mosaic.version = 11 : i64} {
  func.func @_dropout_kernel(%arg0: i32, %arg1: memref<1xi32, #tpu.memory_space<smem>>, %arg2: memref<8x256xf32, #tpu.memory_space<vmem>>, %arg3: memref<8x256xf32, #tpu.memory_space<vmem>>) attributes {dimension_semantics = [#tpu.dimension_semantics<parallel>], iteration_bounds = array<i64: 1>, scalar_prefetch = 1 : i64, scratch_operands = 0 : i64, tpu.core_type = #tpu.core_type<tc>, window_params = [{transform_indices = @transform_0, window_bounds = array<i64: 8, 256>}, {transform_indices = @transform_1, window_bounds = array<i64: 8, 256>}]} {
    %0 = tpu.iota {dimensions = array<i32: 0>} : vector<8x256xi32>
    %1 = tpu.iota {dimensions = array<i32: 1>} : vector<8x256xi32>
    %c8_i32 = arith.constant 8 : i32
    %2 = arith.muli %arg0, %c8_i32 : i32
    %3 = vector.broadcast %2 : i32 to vector<8x256xi32>
    %4 = arith.addi %3, %0 : vector<8x256xi32>
    %c256_i32 = arith.constant 256 : i32
    %5 = vector.broadcast %c256_i32 : i32 to vector<8x256xi32>
    %6 = arith.muli %4, %5 : vector<8x256xi32>
    %7 = arith.addi %6, %1 : vector<8x256xi32>
    %c0 = arith.constant 0 : index
    %8 = memref.load %arg1[%c0] : memref<1xi32, #tpu.memory_space<smem>>
    %c-1640531527_i32 = arith.constant -1640531527 : i32
    %9 = arith.muli %8, %c-1640531527_i32 : i32
    %10 = vector.broadcast %9 : i32 to vector<8x256xi32>
    %11 = arith.addi %7, %10 : vector<8x256xi32>
    %c16_i32 = arith.constant 16 : i32
    %12 = vector.broadcast %c16_i32 : i32 to vector<8x256xi32>
    %13 = arith.shrui %11, %12 : vector<8x256xi32>
    %14 = arith.xori %11, %13 : vector<8x256xi32>
    %c2146121005_i32 = arith.constant 2146121005 : i32
    %15 = vector.broadcast %c2146121005_i32 : i32 to vector<8x256xi32>
    %16 = arith.muli %14, %15 : vector<8x256xi32>
    %c15_i32 = arith.constant 15 : i32
    %17 = vector.broadcast %c15_i32 : i32 to vector<8x256xi32>
    %18 = arith.shrui %16, %17 : vector<8x256xi32>
    %19 = arith.xori %16, %18 : vector<8x256xi32>
    %c-2073254261_i32 = arith.constant -2073254261 : i32
    %20 = vector.broadcast %c-2073254261_i32 : i32 to vector<8x256xi32>
    %21 = arith.muli %19, %20 : vector<8x256xi32>
    %c16_i32_0 = arith.constant 16 : i32
    %22 = vector.broadcast %c16_i32_0 : i32 to vector<8x256xi32>
    %23 = arith.shrui %21, %22 : vector<8x256xi32>
    %24 = arith.xori %21, %23 : vector<8x256xi32>
    %c1288490188_i32 = arith.constant 1288490188 : i32
    %25 = vector.broadcast %c1288490188_i32 : i32 to vector<8x256xi32>
    %26 = arith.cmpi uge, %24, %25 : vector<8x256xi32>
    %c0_1 = arith.constant 0 : index
    %c0_2 = arith.constant 0 : index
    %27 = vector.load %arg2[%c0_1, %c0_2] : memref<8x256xf32, #tpu.memory_space<vmem>>, vector<8x256xf32>
    %cst = arith.constant 1.42857146 : f32
    %28 = vector.broadcast %cst : f32 to vector<8x256xf32>
    %29 = arith.mulf %27, %28 : vector<8x256xf32>
    %cst_3 = arith.constant 0.000000e+00 : f32
    %30 = vector.broadcast %cst_3 : f32 to vector<8x256xf32>
    %31 = arith.select %26, %29, %30 : vector<8x256xi1>, vector<8x256xf32>
    %c0_4 = arith.constant 0 : index
    %c0_5 = arith.constant 0 : index
    %32 = vector.load %arg3[%c0_4, %c0_5] : memref<8x256xf32, #tpu.memory_space<vmem>>, vector<8x256xf32>
    tpu.vector_store %arg3[%c0_4, %c0_5], %31 {strides = array<i32>} : memref<8x256xf32, #tpu.memory_space<vmem>>, vector<8x256xf32>,
    return
  }
  func.func @transform_0(%arg0: i32, %arg1: memref<1xi32, #tpu.memory_space<smem>>) -> (i32, i32) {
    %c0_i32 = arith.constant 0 : i32
    %c0_i32_0 = arith.constant 0 : i32
    return %arg0, %c0_i32 : i32, i32
  }
  func.func @transform_1(%arg0: i32, %arg1: memref<1xi32, #tpu.memory_space<smem>>) -> (i32, i32) {
    %c0_i32 = arith.constant 0 : i32
    %c0_i32_0 = arith.constant 0 : i32
    return %arg0, %c0_i32 : i32, i32
  }
}

</mosaic_0001>

<llo_original>
// kernel: tpu_custom_call.1
$region0: #{tpu_custom_call.1}
  #allocation0 [shape = 'u32[]', space=smem, size = 0x4, offset = 0x4, fixed_abs, tag = 'smem constant byte address 0x4 - core index']
  #allocation1 [shape = 'u32[72,128]{1,0:T(1,128)}', space=vmem, size = 0x9000, scoped, tag = 'internal scratch']
  #allocation2 [shape = 's32[1]{0}', space=sflag, size = 0x4, scoped, tag = 'scoped memory for tpu_custom_call.1']
  #allocation3 [shape = 's32[1]{0:T(128)S(6)}', space=smem, size = 0x200, scoped, tag = 'prefetched SMEM operand 0']
  %s0 = inlined_call_operand.<no memory space> [shape: s32[1], index: 0, kind: input, shape index: {}]
  %s1 = inlined_call_operand.hbm [shape: f32[8,256], index: 1, kind: input, shape index: {}]
  %s2 = inlined_call_operand.hbm [shape: f32[8,256], index: 2, kind: output, shape index: {}]
  %s3 = sld [smem:[#allocation0]]
  $region18: #{tpu_custom_call.1} parent=0
    _
  %s5 = ssub.s32 1, %s3
  %s6 = scalar_select 0, %s5, %s3
  %7 = sst [smem:[#allocation3]] %s0
  $region1: #{tpu_custom_call.1} parent=0
    #allocation4 [shape = 'u8[8192]{0}', space=vmem, size = 0x2000, scoped, tag = 'input window, operand 1, single buffered']
    #allocation5 [shape = 's32[1]{0}', space=sflag, size = 0x4, scoped, tag = 'scoped memory for tpu_custom_call.1']
    #allocation6 [shape = 's32[1]{0}', space=sflag, size = 0x4, scoped, tag = 'scoped memory for tpu_custom_call.1']
    #allocation7 [shape = 'u8[8192]{0}', space=vmem, size = 0x2000, scoped, tag = 'output window, operand 0, single buffered']
    %8 = vsyncpa [#allocation5], 0
    %9 = vsyncpa [#allocation6], 0
    // Predicated region
    $region2: #{tpu_custom_call.1} parent=1 // pred_check
      _
    $region3: #{tpu_custom_call.1} parent=1 // pred_check_branch
      %11 = sbr.rel (0) target = $region5
    $region4: #{tpu_custom_call.1} parent=1 // pred_region
      %13 = vsyncadd [#allocation5], 0
      %s15 = sshll.u32 %s1, 4
      %s16 = int_to_ptr.hbm [resolvable:$true] %s15
      %s17 = sshll.u32 [#allocation4], 4
      %s18 = int_to_ptr.vmem [resolvable:$true] %s17
      %20 = dma.hbm_to_vmem [thread:$0]  %s16, 256, %s18, [#allocation5]
    $region5: #{tpu_custom_call.1} parent=1 // pred_fallthru
      _
    // Predicated region
    $region6: #{tpu_custom_call.1} parent=1 // pred_check
      _
    $region7: #{tpu_custom_call.1} parent=1 // pred_check_branch
      %22 = sbr.rel (0) target = $region9
    $region8: #{tpu_custom_call.1} parent=1 // pred_region
      %24 = dma.done [#allocation5], 256
    $region9: #{tpu_custom_call.1} parent=1 // pred_fallthru
      _
    %v25 = vlaneseq
    %v26 = vshrl.u32 %v25, 7
    %v27 = vlaneseq
    %v28 = vand.u32 %v27, 127
    %v29 = vadd.s32 %v28, 128
    %s30 = smul.u32 0, 8
    %v31 = vstv %s30
    %v32 = vadd.s32 %v31, %v26
    %v33 = vmul.u32 %v32, 256
    %v34 = vadd.s32 %v33, %v28
    %v35 = vadd.s32 %v33, %v29
    %s36 = sld [smem:[#allocation3]]
    %s37 = smul.u32 %s36, 2654435769
    %v38 = vstv %s37
    %v39 = vadd.s32 %v34, %v38
    %v40 = vadd.s32 %v35, %v38
    %v41 = vshrl.u32 %v39, 16
    %v42 = vshrl.u32 %v40, 16
    %v43 = vxor.u32 %v39, %v41
    %v44 = vxor.u32 %v40, %v42
    %v45 = vmul.u32 %v43, 2146121005
    %v46 = vmul.u32 %v44, 2146121005
    %v47 = vshrl.u32 %v45, 15
    %v48 = vshrl.u32 %v46, 15
    %v49 = vxor.u32 %v45, %v47
    %v50 = vxor.u32 %v46, %v48
    %v51 = vmul.u32 %v49, 2221713035
    %v52 = vmul.u32 %v50, 2221713035
    %v53 = vshrl.u32 %v51, 16
    %v54 = vshrl.u32 %v52, 16
    %v55 = vxor.u32 %v51, %v53
    %v56 = vxor.u32 %v52, %v54
    %v57 = vadd.s32 %v55, 2147483648
    %vm59 = vcmp.ge.s32.totalorder %v57, 3435973836
    %v60 = vadd.s32 %v56, 2147483648
    %vm62 = vcmp.ge.s32.totalorder %v60, 3435973836
    %v63 = vld [vmem:[#allocation4] sm:$0xff]
    %v64 = vld [vmem:[#allocation4 + $0x8] sm:$0xff]
    %v65 = vmul.f32 %v63, 1.4285715
    %v66 = vmul.f32 %v64, 1.4285715
    %v67 = vsel %vm59, %v65, 0.0
    %v68 = vsel %vm62, %v66, 0.0
    %69 = vst [vmem:[#allocation7] sm:$0xff] %v67
    %70 = vst [vmem:[#allocation7 + $0x8] sm:$0xff] %v68
    // Predicated region
    $region10: #{tpu_custom_call.1} parent=1 // pred_check
      _
    $region11: #{tpu_custom_call.1} parent=1 // pred_check_branch
      %72 = sbr.rel (0) target = $region13
    $region12: #{tpu_custom_call.1} parent=1 // pred_region
      %74 = vsyncadd [#allocation6], 0
      %s76 = sshll.u32 [#allocation7], 4
      %s77 = int_to_ptr.vmem [resolvable:$true] %s76
      %s78 = sshll.u32 %s2, 4
      %s79 = int_to_ptr.hbm [resolvable:$true] %s78
      %81 = dma.vmem_to_hbm [thread:$0]  %s77, 256, %s79, [#allocation6]
    $region13: #{tpu_custom_call.1} parent=1 // pred_fallthru
      _
    // Predicated region
    $region14: #{tpu_custom_call.1} parent=1 // pred_check
      _
    $region15: #{tpu_custom_call.1} parent=1 // pred_check_branch
      %83 = sbr.rel (0) target = $region17
    $region16: #{tpu_custom_call.1} parent=1 // pred_region
      %85 = dma.done [#allocation6], 256
    $region17: #{tpu_custom_call.1} parent=1 // pred_fallthru
      _
    %86 = vsyncpa [#allocation5], 1
    %87 = vsyncpa [#allocation6], 1

</llo_original>
